<compile_context>
chip_gen: v7x
topology: tpu7x:2x2x1
jax: 0.10.0
libtpu: 0.0.40
codegen_flags: <defaults>
</compile_context>

<pallas_src>
import functools

import jax
import jax.numpy as jnp
from jax.experimental import pallas as pl
from jax.experimental.pallas import tpu as pltpu


def _split_dma_kernel(bn, x_hbm, s0_hbm, s1_hbm, s2_hbm, copy_sems):
    """One grid step: copy `bn` batch rows of each of the 3 channels, HBM->HBM.

    All refs are in HBM (memory_space=pl.ANY); the kernel never touches VMEM or
    the VPU -- it only issues three strided-rectangular DMAs and waits on them.
    Source slice (bn, 1, HW) of the (N, 3, HW) input maps to the same-shaped
    slice of split output c: a contiguous HW-run per row with outer stride 3*HW,
    which DMA engines handle at full bandwidth.
    """
    rows = pl.ds(pl.program_id(0) * bn, bn)
    copies = []
    for c, dst in enumerate((s0_hbm, s1_hbm, s2_hbm)):
        cp = pltpu.make_async_copy(
            x_hbm.at[rows, pl.ds(c, 1), :],   # (bn, 1, HW) channel-c slice
            dst.at[rows],                     # (bn, 1, HW) of split output c
            copy_sems.at[c],
        )
        cp.start()
        copies.append(cp)
    for cp in copies:
        cp.wait()


def _choose_batch_chunk(n, hw, itemsize, target_bytes=8 << 20):
    """Batch rows per grid step: ~8 MiB of input per step (pure DMA, no VMEM
    usage), kept as an exact divisor of N so the grid has no ragged tail."""
    row_bytes = 3 * hw * itemsize
    bn = max(1, min(n, target_bytes // max(row_bytes, 1)))
    while n % bn != 0:
        bn -= 1
    return bn


def _split_channels(x_flat):
    """x_flat: (N, 3, HW) -> three (N, 1, HW) channel splits via HBM->HBM DMA."""
    n, c, hw = x_flat.shape
    assert c == 3
    bn = _choose_batch_chunk(n, hw, x_flat.dtype.itemsize)
    grid = (n // bn,)

    split_shape = jax.ShapeDtypeStruct((n, 1, hw), x_flat.dtype)
    any_spec = pl.BlockSpec(memory_space=pl.ANY)

    return pl.pallas_call(
        functools.partial(_split_dma_kernel, bn),
        out_shape=(split_shape, split_shape, split_shape),
        grid=grid,
        in_specs=[any_spec],
        out_specs=(any_spec, any_spec, any_spec),
        scratch_shapes=[pltpu.SemaphoreType.DMA((3,))],
        # Pure DMA-issue work per step; "arbitrary" is safe and costs nothing
        # here since the DMA engines (not the TensorCore) move the bytes.
        compiler_params=pltpu.CompilerParams(
            dimension_semantics=("arbitrary",)),
    )(x_flat)


def model_forward(v1):
    """JAX/Pallas equivalent of Model.forward: returns (cat, (s0, s1, s2))."""
    n, c, h, w = v1.shape
    assert c == 3, "split([1, 1, 1], dim=1) requires 3 channels"
    # Merge H,W -> HW (row-major bitcast) so each channel's data is one
    # contiguous run per batch row for the DMA.
    x_flat = v1.reshape(n, 3, h * w)
    s0, s1, s2 = _split_channels(x_flat)
    splits = tuple(s.reshape(n, 1, h, w) for s in (s0, s1, s2))
    # torch.cat(torch.split(v1, [1,1,1], 1), 1) is bit-identical to v1, so the
    # concatenated tensor is simply v1 itself (immutable in JAX): zero copies.
    return v1, splits


model_forward_jit = jax.jit(model_forward)


if __name__ == "__main__":
    key = jax.random.PRNGKey(0)
    k_in, _k_unused = jax.random.split(key)

    # Small NCHW input with C=3 so split([1, 1, 1], dim=1) is valid.
    N, C, H, W = 2, 3, 16, 16
    v1 = jax.random.normal(k_in, (N, C, H, W), jnp.float32)

    cat, splits = jax.block_until_ready(model_forward_jit(v1))

    # Sanity checks against the reference semantics (bit-exact copies).
    assert cat.shape == (N, 3, H, W)
    assert all(s.shape == (N, 1, H, W) for s in splits)
    assert bool(jnp.array_equal(cat, v1))
    for c in range(3):
        assert bool(jnp.array_equal(splits[c], v1[:, c:c + 1, :, :]))

    print("KERNEL_OK")
</pallas_src>

<mosaic_0001>
module attributes {stable_mosaic.version = 11 : i64} {
  func.func @_split_dma_kernel(%arg0: i32, %arg1: memref<2x3x256xf32, #tpu.memory_space<any>>, %arg2: memref<2x1x256xf32, #tpu.memory_space<any>>, %arg3: memref<2x1x256xf32, #tpu.memory_space<any>>, %arg4: memref<2x1x256xf32, #tpu.memory_space<any>>, %arg5: memref<3x!tpu.dma_semaphore, #tpu.memory_space<semaphore_mem>>) attributes {dimension_semantics = [#tpu.dimension_semantics<arbitrary>], iteration_bounds = array<i64: 1>, scalar_prefetch = 0 : i64, scratch_operands = 1 : i64, tpu.core_type = #tpu.core_type<tc>, window_params = [{}, {}, {}, {}]} {
    %c2_i32 = arith.constant 2 : i32
    %0 = arith.muli %arg0, %c2_i32 : i32
    %c0_i32 = arith.constant 0 : i32
    %c0_i32_0 = arith.constant 0 : i32
    %c0_i32_1 = arith.constant 0 : i32
    %1 = tpu.memref_slice %arg1[%0, %c0_i32_0, %c0_i32_1] : memref<2x3x256xf32, #tpu.memory_space<any>> -> memref<2x1x256xf32, #tpu.memory_space<any>>
    %c0_i32_2 = arith.constant 0 : i32
    %c0_i32_3 = arith.constant 0 : i32
    %2 = tpu.memref_slice %arg2[%0, %c0_i32_2, %c0_i32_3] : memref<2x1x256xf32, #tpu.memory_space<any>> -> memref<2x1x256xf32, #tpu.memory_space<any>>
    %3 = tpu.memref_slice %arg5[%c0_i32] : memref<3x!tpu.dma_semaphore, #tpu.memory_space<semaphore_mem>> -> memref<1x!tpu.dma_semaphore, #tpu.memory_space<semaphore_mem>>
    %4 = tpu.memref_squeeze %3 : memref<1x!tpu.dma_semaphore, #tpu.memory_space<semaphore_mem>> -> memref<!tpu.dma_semaphore, #tpu.memory_space<semaphore_mem>>
    tpu.enqueue_dma source(%1 : memref<2x1x256xf32, #tpu.memory_space<any>>) target(%2 : memref<2x1x256xf32, #tpu.memory_space<any>>) target_semaphore(%4 : memref<!tpu.dma_semaphore, #tpu.memory_space<semaphore_mem>>)
    %c1_i32 = arith.constant 1 : i32
    %c1_i32_4 = arith.constant 1 : i32
    %c0_i32_5 = arith.constant 0 : i32
    %5 = tpu.memref_slice %arg1[%0, %c1_i32_4, %c0_i32_5] : memref<2x3x256xf32, #tpu.memory_space<any>> -> memref<2x1x256xf32, #tpu.memory_space<any>>
    %c0_i32_6 = arith.constant 0 : i32
    %c0_i32_7 = arith.constant 0 : i32
    %6 = tpu.memref_slice %arg3[%0, %c0_i32_6, %c0_i32_7] : memref<2x1x256xf32, #tpu.memory_space<any>> -> memref<2x1x256xf32, #tpu.memory_space<any>>
    %7 = tpu.memref_slice %arg5[%c1_i32] : memref<3x!tpu.dma_semaphore, #tpu.memory_space<semaphore_mem>> -> memref<1x!tpu.dma_semaphore, #tpu.memory_space<semaphore_mem>>
    %8 = tpu.memref_squeeze %7 : memref<1x!tpu.dma_semaphore, #tpu.memory_space<semaphore_mem>> -> memref<!tpu.dma_semaphore, #tpu.memory_space<semaphore_mem>>
    tpu.enqueue_dma source(%5 : memref<2x1x256xf32, #tpu.memory_space<any>>) target(%6 : memref<2x1x256xf32, #tpu.memory_space<any>>) target_semaphore(%8 : memref<!tpu.dma_semaphore, #tpu.memory_space<semaphore_mem>>)
    %c2_i32_8 = arith.constant 2 : i32
    %c2_i32_9 = arith.constant 2 : i32
    %c0_i32_10 = arith.constant 0 : i32
    %9 = tpu.memref_slice %arg1[%0, %c2_i32_9, %c0_i32_10] : memref<2x3x256xf32, #tpu.memory_space<any>> -> memref<2x1x256xf32, #tpu.memory_space<any>>
    %c0_i32_11 = arith.constant 0 : i32
    %c0_i32_12 = arith.constant 0 : i32
    %10 = tpu.memref_slice %arg4[%0, %c0_i32_11, %c0_i32_12] : memref<2x1x256xf32, #tpu.memory_space<any>> -> memref<2x1x256xf32, #tpu.memory_space<any>>
    %11 = tpu.memref_slice %arg5[%c2_i32_8] : memref<3x!tpu.dma_semaphore, #tpu.memory_space<semaphore_mem>> -> memref<1x!tpu.dma_semaphore, #tpu.memory_space<semaphore_mem>>
    %12 = tpu.memref_squeeze %11 : memref<1x!tpu.dma_semaphore, #tpu.memory_space<semaphore_mem>> -> memref<!tpu.dma_semaphore, #tpu.memory_space<semaphore_mem>>
    tpu.enqueue_dma source(%9 : memref<2x1x256xf32, #tpu.memory_space<any>>) target(%10 : memref<2x1x256xf32, #tpu.memory_space<any>>) target_semaphore(%12 : memref<!tpu.dma_semaphore, #tpu.memory_space<semaphore_mem>>)
    %c0_i32_13 = arith.constant 0 : i32
    %c0_i32_14 = arith.constant 0 : i32
    %c0_i32_15 = arith.constant 0 : i32
    %13 = tpu.memref_slice %arg1[%0, %c0_i32_14, %c0_i32_15] : memref<2x3x256xf32, #tpu.memory_space<any>> -> memref<2x1x256xf32, #tpu.memory_space<any>>
    %c0_i32_16 = arith.constant 0 : i32
    %c0_i32_17 = arith.constant 0 : i32
    %14 = tpu.memref_slice %arg2[%0, %c0_i32_16, %c0_i32_17] : memref<2x1x256xf32, #tpu.memory_space<any>> -> memref<2x1x256xf32, #tpu.memory_space<any>>
    %15 = tpu.memref_slice %arg5[%c0_i32_13] : memref<3x!tpu.dma_semaphore, #tpu.memory_space<semaphore_mem>> -> memref<1x!tpu.dma_semaphore, #tpu.memory_space<semaphore_mem>>
    %16 = tpu.memref_squeeze %15 : memref<1x!tpu.dma_semaphore, #tpu.memory_space<semaphore_mem>> -> memref<!tpu.dma_semaphore, #tpu.memory_space<semaphore_mem>>
    tpu.wait_dma2 semaphore(%16 : memref<!tpu.dma_semaphore, #tpu.memory_space<semaphore_mem>>) src(%13 : memref<2x1x256xf32, #tpu.memory_space<any>>) dst(%14 : memref<2x1x256xf32, #tpu.memory_space<any>>)
    %c1_i32_18 = arith.constant 1 : i32
    %c1_i32_19 = arith.constant 1 : i32
    %c0_i32_20 = arith.constant 0 : i32
    %17 = tpu.memref_slice %arg1[%0, %c1_i32_19, %c0_i32_20] : memref<2x3x256xf32, #tpu.memory_space<any>> -> memref<2x1x256xf32, #tpu.memory_space<any>>
    %c0_i32_21 = arith.constant 0 : i32
    %c0_i32_22 = arith.constant 0 : i32
    %18 = tpu.memref_slice %arg3[%0, %c0_i32_21, %c0_i32_22] : memref<2x1x256xf32, #tpu.memory_space<any>> -> memref<2x1x256xf32, #tpu.memory_space<any>>
    %19 = tpu.memref_slice %arg5[%c1_i32_18] : memref<3x!tpu.dma_semaphore, #tpu.memory_space<semaphore_mem>> -> memref<1x!tpu.dma_semaphore, #tpu.memory_space<semaphore_mem>>
    %20 = tpu.memref_squeeze %19 : memref<1x!tpu.dma_semaphore, #tpu.memory_space<semaphore_mem>> -> memref<!tpu.dma_semaphore, #tpu.memory_space<semaphore_mem>>
    tpu.wait_dma2 semaphore(%20 : memref<!tpu.dma_semaphore, #tpu.memory_space<semaphore_mem>>) src(%17 : memref<2x1x256xf32, #tpu.memory_space<any>>) dst(%18 : memref<2x1x256xf32, #tpu.memory_space<any>>)
    %c2_i32_23 = arith.constant 2 : i32
    %c2_i32_24 = arith.constant 2 : i32
    %c0_i32_25 = arith.constant 0 : i32
    %21 = tpu.memref_slice %arg1[%0, %c2_i32_24, %c0_i32_25] : memref<2x3x256xf32, #tpu.memory_space<any>> -> memref<2x1x256xf32, #tpu.memory_space<any>>
    %c0_i32_26 = arith.constant 0 : i32
    %c0_i32_27 = arith.constant 0 : i32
    %22 = tpu.memref_slice %arg4[%0, %c0_i32_26, %c0_i32_27] : memref<2x1x256xf32, #tpu.memory_space<any>> -> memref<2x1x256xf32, #tpu.memory_space<any>>
    %23 = tpu.memref_slice %arg5[%c2_i32_23] : memref<3x!tpu.dma_semaphore, #tpu.memory_space<semaphore_mem>> -> memref<1x!tpu.dma_semaphore, #tpu.memory_space<semaphore_mem>>
    %24 = tpu.memref_squeeze %23 : memref<1x!tpu.dma_semaphore, #tpu.memory_space<semaphore_mem>> -> memref<!tpu.dma_semaphore, #tpu.memory_space<semaphore_mem>>
    tpu.wait_dma2 semaphore(%24 : memref<!tpu.dma_semaphore, #tpu.memory_space<semaphore_mem>>) src(%21 : memref<2x1x256xf32, #tpu.memory_space<any>>) dst(%22 : memref<2x1x256xf32, #tpu.memory_space<any>>)
    return
  }
}

</mosaic_0001>

<llo_original>
// kernel: model_forward.1
$region0: #{model_forward.1}
  #allocation0 [shape = 'u32[]', space=smem, size = 0x4, offset = 0x4, fixed_abs, tag = 'smem constant byte address 0x4 - core index']
  #allocation1 [shape = 'u32[144,128]{1,0:T(1,128)}', space=vmem, size = 0x12000, scoped, tag = 'internal scratch']
  #allocation2 [shape = 's32[3]{0}', space=sflag, size = 0xc, scoped, tag = 'scratch operand']
  #allocation3 [shape = 's32[]', space=sflag, size = 0x4, offset = 0, fixed_abs, tag = 'sflag constant byte address 0x0 - dummy sync flag']
  #allocation4 [shape = 's32[]', space=sflag, size = 0x4, offset = 0, fixed_abs, tag = 'sflag constant byte address 0x0 - dummy sync flag']
  #allocation5 [shape = 's32[]', space=sflag, size = 0x4, offset = 0, fixed_abs, tag = 'sflag constant byte address 0x0 - dummy sync flag']
  %s0 = inlined_call_operand.vmem [shape: f32[2,3,256], index: 0, kind: input, shape index: {}]
  %s1 = inlined_call_operand.vmem [shape: f32[2,1,256], index: 1, kind: output, shape index: {0}]
  %s2 = inlined_call_operand.vmem [shape: f32[2,1,256], index: 2, kind: output, shape index: {1}]
  %s3 = inlined_call_operand.vmem [shape: f32[2,1,256], index: 3, kind: output, shape index: {2}]
  %4 = xla_tuple %s1, %s2, %s3
  %s5 = sld [smem:[#allocation0]]
  $region92: #{model_forward.1} parent=0
    _
  %s7 = ssub.s32 1, %s5
  %s8 = scalar_select 0, %s7, %s5
  %s9 = smul.u32 0, 2
  %s10 = smul.u32 %s9, 8
  %s11 = scalar_lea.vmem %s0, %s10
  %s12 = smul.u32 %s9, 2
  %s13 = scalar_lea.vmem %s1, %s12
  %p15 = scmp.lt.u32.totalorder 1, 8
  %p16 = pneg %p15
  // Predicated region
  $region2: #{model_forward.1} parent=0 // pred_check
    _
  $region3: #{model_forward.1} parent=0 // pred_check_branch
    %18 = sbr.rel (%p15) target = $region5
  $region4: #{model_forward.1} parent=0 // pred_region
    %s39 = sand.u32 1, 7
    %p40 = scmp.eq.s32.totalorder %s39, 0
    %p41 = pneg %p40
    // Predicated region
    $region17: #{model_forward.1} parent=4 // pred_check
      _
    $region18: #{model_forward.1} parent=4 // pred_check_branch
      %43 = sbr.rel (%p40) target = $region20
    $region19: #{model_forward.1} parent=4 // pred_region
      %s44 = sand.u32 1, 7
      %s45 = ssub.s32 1, %s44
      %s46 = scalar_lea.vmem %s11, %s45
      %s47 = ssub.s32 1, %s44
      %s48 = scalar_lea.vmem %s13, %s47
      %s49 = sshllo.u32 0, %s44
      loop: start=0, step=1, limit=1
      $region21: #{model_forward.1} parent=19 // loop_pre_header
        _
      $region22: #{model_forward.1} parent=19 // loop_header
        %s51 = sphi 0, %s55
        %p52 = scmp.ge.s32.totalorder %s51, 1
        %s56 = sphi %s46, %s46
        %s57 = sphi %s48, %s48
      $region23: #{model_forward.1} parent=19 // loop_header_branch
        %54 = sbr.rel (%p52) target = $region27
      $region24: #{model_forward.1} parent=19 // loop_body
        %v58 = vld [vmem:[%s56] sm:%s49]
        %59 = vst [vmem:[%s57] sm:%s49] %v58
        %v60 = vld [vmem:[%s56 + $0x4] sm:%s49]
        %61 = vst [vmem:[%s57 + $0x1] sm:%s49] %v60
        %v62 = vld [vmem:[%s56 + $0x8] sm:%s49]
        %63 = vst [vmem:[%s57 + $0x2] sm:%s49] %v62
        %v64 = vld [vmem:[%s56 + $0xc] sm:%s49]
        %65 = vst [vmem:[%s57 + $0x3] sm:%s49] %v64
      $region25: #{model_forward.1} parent=19 // loop_footer
        %s55 = sadd.s32 1, %s51
      $region26: #{model_forward.1} parent=19 // loop_footer_branch
        %50 = sbr.rel target = $region22
      $region27: #{model_forward.1} parent=19 // loop_exit
        _
    $region20: #{model_forward.1} parent=4 // pred_fallthru
      _
  $region5: #{model_forward.1} parent=0 // pred_fallthru
    _
  // Predicated region
  $region6: #{model_forward.1} parent=0 // pred_check
    %p19 = pneg %p15
  $region7: #{model_forward.1} parent=0 // pred_check_branch
    %21 = sbr.rel (%p19) target = $region9
  $region8: #{model_forward.1} parent=0 // pred_region
    %s22 = sshllo.u32 0, 1
    loop: start=0, step=1, limit=1
    $region10: #{model_forward.1} parent=8 // loop_pre_header
      _
    $region11: #{model_forward.1} parent=8 // loop_header
      %s24 = sphi 0, %s28
      %p25 = scmp.ge.s32.totalorder %s24, 1
      %s29 = sphi %s11, %s11
      %s30 = sphi %s13, %s13
    $region12: #{model_forward.1} parent=8 // loop_header_branch
      %27 = sbr.rel (%p25) target = $region16
    $region13: #{model_forward.1} parent=8 // loop_body
      %v31 = vld [vmem:[%s29] sm:%s22]
      %32 = vst [vmem:[%s30] sm:%s22] %v31
      %v33 = vld [vmem:[%s29 + $0x4] sm:%s22]
      %34 = vst [vmem:[%s30 + $0x1] sm:%s22] %v33
      %v35 = vld [vmem:[%s29 + $0x8] sm:%s22]
      %36 = vst [vmem:[%s30 + $0x2] sm:%s22] %v35
      %v37 = vld [vmem:[%s29 + $0xc] sm:%s22]
      %38 = vst [vmem:[%s30 + $0x3] sm:%s22] %v37
    $region14: #{model_forward.1} parent=8 // loop_footer
      %s28 = sadd.s32 1, %s24
    $region15: #{model_forward.1} parent=8 // loop_footer_branch
      %23 = sbr.rel target = $region11
    $region16: #{model_forward.1} parent=8 // loop_exit
      _
  $region9: #{model_forward.1} parent=0 // pred_fallthru
    _
  // Predicated region
  $region28: #{model_forward.1} parent=0 // pred_check
    _
  $region29: #{model_forward.1} parent=0 // pred_check_branch
    %68 = sbr.rel (0) target = $region31
  $region30: #{model_forward.1} parent=0 // pred_region
    %69 = vsyncadd [#allocation2], 64
  $region31: #{model_forward.1} parent=0 // pred_fallthru
    _
  %s70 = sadd.s32 1, %s10
  %s71 = scalar_lea.vmem %s0, %s70
  %s72 = scalar_lea.vmem %s2, %s12
  %s73 = scalar_lea.sflag [#allocation2], 1
  %p75 = scmp.lt.u32.totalorder 1, 8
  %p76 = pneg %p75
  // Predicated region
  $region32: #{model_forward.1} parent=0 // pred_check
    _
  $region33: #{model_forward.1} parent=0 // pred_check_branch
    %78 = sbr.rel (%p75) target = $region35
  $region34: #{model_forward.1} parent=0 // pred_region
    %s99 = sand.u32 1, 7
    %p100 = scmp.eq.s32.totalorder %s99, 0
    %p101 = pneg %p100
    // Predicated region
    $region47: #{model_forward.1} parent=34 // pred_check
      _
    $region48: #{model_forward.1} parent=34 // pred_check_branch
      %103 = sbr.rel (%p100) target = $region50
    $region49: #{model_forward.1} parent=34 // pred_region
      %s104 = sand.u32 1, 7
      %s105 = ssub.s32 1, %s104
      %s106 = scalar_lea.vmem %s71, %s105
      %s107 = ssub.s32 1, %s104
      %s108 = scalar_lea.vmem %s72, %s107
      %s109 = sshllo.u32 0, %s104
      loop: start=0, step=1, limit=1
      $region51: #{model_forward.1} parent=49 // loop_pre_header
        _
      $region52: #{model_forward.1} parent=49 // loop_header
        %s111 = sphi 0, %s115
        %p112 = scmp.ge.s32.totalorder %s111, 1
        %s116 = sphi %s106, %s106
        %s117 = sphi %s108, %s108
      $region53: #{model_forward.1} parent=49 // loop_header_branch
        %114 = sbr.rel (%p112) target = $region57
      $region54: #{model_forward.1} parent=49 // loop_body
        %v118 = vld [vmem:[%s116] sm:%s109]
        %119 = vst [vmem:[%s117] sm:%s109] %v118
        %v120 = vld [vmem:[%s116 + $0x4] sm:%s109]
        %121 = vst [vmem:[%s117 + $0x1] sm:%s109] %v120
        %v122 = vld [vmem:[%s116 + $0x8] sm:%s109]
        %123 = vst [vmem:[%s117 + $0x2] sm:%s109] %v122
        %v124 = vld [vmem:[%s116 + $0xc] sm:%s109]
        %125 = vst [vmem:[%s117 + $0x3] sm:%s109] %v124
      $region55: #{model_forward.1} parent=49 // loop_footer
        %s115 = sadd.s32 1, %s111
      $region56: #{model_forward.1} parent=49 // loop_footer_branch
        %110 = sbr.rel target = $region52
      $region57: #{model_forward.1} parent=49 // loop_exit
        _
    $region50: #{model_forward.1} parent=34 // pred_fallthru
      _
  $region35: #{model_forward.1} parent=0 // pred_fallthru
    _
  // Predicated region
  $region36: #{model_forward.1} parent=0 // pred_check
    %p79 = pneg %p75
  $region37: #{model_forward.1} parent=0 // pred_check_branch
    %81 = sbr.rel (%p79) target = $region39
  $region38: #{model_forward.1} parent=0 // pred_region
    %s82 = sshllo.u32 0, 1
    loop: start=0, step=1, limit=1
    $region40: #{model_forward.1} parent=38 // loop_pre_header
      _
    $region41: #{model_forward.1} parent=38 // loop_header
      %s84 = sphi 0, %s88
      %p85 = scmp.ge.s32.totalorder %s84, 1
      %s89 = sphi %s71, %s71
      %s90 = sphi %s72, %s72
    $region42: #{model_forward.1} parent=38 // loop_header_branch
      %87 = sbr.rel (%p85) target = $region46
    $region43: #{model_forward.1} parent=38 // loop_body
      %v91 = vld [vmem:[%s89] sm:%s82]
      %92 = vst [vmem:[%s90] sm:%s82] %v91
      %v93 = vld [vmem:[%s89 + $0x4] sm:%s82]
      %94 = vst [vmem:[%s90 + $0x1] sm:%s82] %v93
      %v95 = vld [vmem:[%s89 + $0x8] sm:%s82]
      %96 = vst [vmem:[%s90 + $0x2] sm:%s82] %v95
      %v97 = vld [vmem:[%s89 + $0xc] sm:%s82]
      %98 = vst [vmem:[%s90 + $0x3] sm:%s82] %v97
    $region44: #{model_forward.1} parent=38 // loop_footer
      %s88 = sadd.s32 1, %s84
    $region45: #{model_forward.1} parent=38 // loop_footer_branch
      %83 = sbr.rel target = $region41
    $region46: #{model_forward.1} parent=38 // loop_exit
      _
  $region39: #{model_forward.1} parent=0 // pred_fallthru
    _
  // Predicated region
  $region58: #{model_forward.1} parent=0 // pred_check
    _
  $region59: #{model_forward.1} parent=0 // pred_check_branch
    %128 = sbr.rel (0) target = $region61
  $region60: #{model_forward.1} parent=0 // pred_region
    %129 = vsyncadd %s73, 64
  $region61: #{model_forward.1} parent=0 // pred_fallthru
    _
  %s130 = sadd.s32 2, %s10
  %s131 = scalar_lea.vmem %s0, %s130
  %s132 = scalar_lea.vmem %s3, %s12
  %s133 = scalar_lea.sflag [#allocation2], 2
  %p135 = scmp.lt.u32.totalorder 1, 8
  %p136 = pneg %p135
  // Predicated region
  $region62: #{model_forward.1} parent=0 // pred_check
    _
  $region63: #{model_forward.1} parent=0 // pred_check_branch
    %138 = sbr.rel (%p135) target = $region65
  $region64: #{model_forward.1} parent=0 // pred_region
    %s159 = sand.u32 1, 7
    %p160 = scmp.eq.s32.totalorder %s159, 0
    %p161 = pneg %p160
    // Predicated region
    $region77: #{model_forward.1} parent=64 // pred_check
      _
    $region78: #{model_forward.1} parent=64 // pred_check_branch
      %163 = sbr.rel (%p160) target = $region80
    $region79: #{model_forward.1} parent=64 // pred_region
      %s164 = sand.u32 1, 7
      %s165 = ssub.s32 1, %s164
      %s166 = scalar_lea.vmem %s131, %s165
      %s167 = ssub.s32 1, %s164
      %s168 = scalar_lea.vmem %s132, %s167
      %s169 = sshllo.u32 0, %s164
      loop: start=0, step=1, limit=1
      $region81: #{model_forward.1} parent=79 // loop_pre_header
        _
      $region82: #{model_forward.1} parent=79 // loop_header
        %s171 = sphi 0, %s175
        %p172 = scmp.ge.s32.totalorder %s171, 1
        %s176 = sphi %s166, %s166
        %s177 = sphi %s168, %s168
      $region83: #{model_forward.1} parent=79 // loop_header_branch
        %174 = sbr.rel (%p172) target = $region87
      $region84: #{model_forward.1} parent=79 // loop_body
        %v178 = vld [vmem:[%s176] sm:%s169]
        %179 = vst [vmem:[%s177] sm:%s169] %v178
        %v180 = vld [vmem:[%s176 + $0x4] sm:%s169]
        %181 = vst [vmem:[%s177 + $0x1] sm:%s169] %v180
        %v182 = vld [vmem:[%s176 + $0x8] sm:%s169]
        %183 = vst [vmem:[%s177 + $0x2] sm:%s169] %v182
        %v184 = vld [vmem:[%s176 + $0xc] sm:%s169]
        %185 = vst [vmem:[%s177 + $0x3] sm:%s169] %v184
      $region85: #{model_forward.1} parent=79 // loop_footer
        %s175 = sadd.s32 1, %s171
      $region86: #{model_forward.1} parent=79 // loop_footer_branch
        %170 = sbr.rel target = $region82
      $region87: #{model_forward.1} parent=79 // loop_exit
        _
    $region80: #{model_forward.1} parent=64 // pred_fallthru
      _
  $region65: #{model_forward.1} parent=0 // pred_fallthru
    _
  // Predicated region
  $region66: #{model_forward.1} parent=0 // pred_check
    %p139 = pneg %p135
  $region67: #{model_forward.1} parent=0 // pred_check_branch
    %141 = sbr.rel (%p139) target = $region69
  $region68: #{model_forward.1} parent=0 // pred_region
    %s142 = sshllo.u32 0, 1
    loop: start=0, step=1, limit=1
    $region70: #{model_forward.1} parent=68 // loop_pre_header
      _
    $region71: #{model_forward.1} parent=68 // loop_header
      %s144 = sphi 0, %s148
      %p145 = scmp.ge.s32.totalorder %s144, 1
      %s149 = sphi %s131, %s131
      %s150 = sphi %s132, %s132
    $region72: #{model_forward.1} parent=68 // loop_header_branch
      %147 = sbr.rel (%p145) target = $region76
    $region73: #{model_forward.1} parent=68 // loop_body
      %v151 = vld [vmem:[%s149] sm:%s142]
      %152 = vst [vmem:[%s150] sm:%s142] %v151
      %v153 = vld [vmem:[%s149 + $0x4] sm:%s142]
      %154 = vst [vmem:[%s150 + $0x1] sm:%s142] %v153
      %v155 = vld [vmem:[%s149 + $0x8] sm:%s142]
      %156 = vst [vmem:[%s150 + $0x2] sm:%s142] %v155
      %v157 = vld [vmem:[%s149 + $0xc] sm:%s142]
      %158 = vst [vmem:[%s150 + $0x3] sm:%s142] %v157
    $region74: #{model_forward.1} parent=68 // loop_footer
      %s148 = sadd.s32 1, %s144
    $region75: #{model_forward.1} parent=68 // loop_footer_branch
      %143 = sbr.rel target = $region71
    $region76: #{model_forward.1} parent=68 // loop_exit
      _
  $region69: #{model_forward.1} parent=0 // pred_fallthru
    _
  // Predicated region
  $region88: #{model_forward.1} parent=0 // pred_check
    _
  $region89: #{model_forward.1} parent=0 // pred_check_branch
    %188 = sbr.rel (0) target = $region91
  $region90: #{model_forward.1} parent=0 // pred_region
    %189 = vsyncadd %s133, 64
  $region91: #{model_forward.1} parent=0 // pred_fallthru
    _
  %s190 = smul.u32 2, 1
  %s191 = smul.u32 %s190, 2
  %s192 = sshll.u32 %s191, 4
  %193 = dma.done [#allocation2], %s192
  %s194 = sshll.u32 %s191, 4
  %195 = dma.done %s73, %s194
  %s196 = sshll.u32 %s191, 4
  %197 = dma.done %s133, %s196
  %198 = vsyncmov [#allocation2]
  %s199 = vpop.sfrf %198
  %p200 = scmp.eq.s32.totalorder %s199, 0
  %p201 = pneg %p200
  %203 = shalt.err (%p201)
  %s204 = scalar_lea.sflag [#allocation2], 1
  %205 = vsyncmov %s204
  %s206 = vpop.sfrf %205
  %p207 = scmp.eq.s32.totalorder %s206, 0
  %p208 = pneg %p207
  %210 = shalt.err (%p208)
  %s211 = scalar_lea.sflag [#allocation2], 2
  %212 = vsyncmov %s211
  %s213 = vpop.sfrf %212
  %p214 = scmp.eq.s32.totalorder %s213, 0
  %p215 = pneg %p214
  %217 = shalt.err (%p215)

</llo_original>
